<compile_context>
chip_gen: v7x
topology: tpu7x:2x2x1
jax: 0.10.0
libtpu: 0.0.40
codegen_flags: <defaults>
</compile_context>

<pallas_src>
import functools

import jax
import jax.numpy as jnp
from jax.experimental import pallas as pl
from jax.experimental.pallas import tpu as pltpu

_BETA = 0.1
_LANES = 128
_SUBLANES = 8
_TM_MAX = 2048          # (2048, 128) f32 block = 1 MiB per pipeline buffer
_NUM_PARALLEL = 2       # leading "parallel" grid axis (both TCs on v7x)


def _smooth_l1_partial_kernel(x_ref, y_ref, out_ref, *,
                              beta, inv_2beta, half_beta,
                              tm, m_rows, steps, apply_mask):
    p = pl.program_id(0)   # parallel axis (core split on v7x)
    k = pl.program_id(1)   # reduction axis ("arbitrary")

    @pl.when(k == 0)
    def _():
        out_ref[...] = jnp.zeros_like(out_ref)

    x = x_ref[...].astype(jnp.float32)
    y = y_ref[...].astype(jnp.float32)
    d = x - y
    ad = jnp.abs(d)
    # SmoothL1: 0.5*d^2/beta if |d| < beta else |d| - 0.5*beta
    loss = jnp.where(ad < beta, d * d * inv_2beta, ad - half_beta)

    if apply_mask:
        # Mask rows past the true row count (ragged last block and any phantom
        # block created by the parallel split). Uses the *logical* (unclamped)
        # block index so clamped duplicate DMAs contribute exactly zero.
        row = jax.lax.broadcasted_iota(jnp.int32, (tm, _LANES), 0)
        global_row = (p * steps + k) * tm + row
        loss = jnp.where(global_row < m_rows, loss, 0.0)

    # Pure VPU vreg adds into an (8, 128) partial; no per-step cross-lane reduce.
    partial = jnp.sum(loss.reshape(tm // _SUBLANES, _SUBLANES, _LANES), axis=0)
    out_ref[...] += partial.reshape(1, _SUBLANES, _LANES)


def weight_smooth_l1_loss(inp, target, beta=_BETA):
    assert inp.shape == target.shape, "input/target shapes must match"
    assert beta > 0.0, "beta must be > 0"
    n = inp.size

    x = jnp.ravel(inp)
    y = jnp.ravel(target)

    inv_2beta = float(0.5 / beta)
    half_beta = float(0.5 * beta)

    # Main part: a multiple of 8*128 = 1024 elements -> free reshape to
    # (m, 128) with m a multiple of 8. The (< 1024 element) tail is handled in
    # plain JAX below.
    chunk = _SUBLANES * _LANES
    n_main = (n // chunk) * chunk
    m = n_main // _LANES

    total = jnp.float32(0.0)

    if m > 0:
        x2d = x[:n_main].reshape(m, _LANES)
        y2d = y[:n_main].reshape(m, _LANES)

        tm = min(_TM_MAX, m)                      # multiple of 8 by construction
        nblocks = pl.cdiv(m, tm)
        num_parallel = _NUM_PARALLEL if nblocks >= 2 else 1
        steps = pl.cdiv(nblocks, num_parallel)
        # Exact cover iff no ragged last block and no phantom block from the split.
        apply_mask = (num_parallel * steps * tm) != m

        def in_map(p, k):
            # Clamp so the DMA always targets a valid block; the in-kernel mask
            # (computed from the logical index) zeroes duplicated contributions.
            return (jnp.minimum(p * steps + k, nblocks - 1), 0)

        kernel = functools.partial(
            _smooth_l1_partial_kernel,
            beta=beta, inv_2beta=inv_2beta, half_beta=half_beta,
            tm=tm, m_rows=m, steps=steps, apply_mask=apply_mask)

        itemsize = jnp.dtype(x2d.dtype).itemsize
        partials = pl.pallas_call(
            kernel,
            out_shape=jax.ShapeDtypeStruct(
                (num_parallel, _SUBLANES, _LANES), jnp.float32),
            grid_spec=pltpu.PrefetchScalarGridSpec(
                num_scalar_prefetch=0,
                grid=(num_parallel, steps),
                in_specs=[
                    pl.BlockSpec((tm, _LANES), in_map),
                    pl.BlockSpec((tm, _LANES), in_map),
                ],
                out_specs=pl.BlockSpec(
                    (1, _SUBLANES, _LANES), lambda p, k: (p, 0, 0)),
            ),
            compiler_params=pltpu.CompilerParams(
                dimension_semantics=("parallel", "arbitrary")),
            cost_estimate=pl.CostEstimate(
                flops=6 * n_main,
                transcendentals=0,
                bytes_accessed=2 * n_main * itemsize
                + num_parallel * _SUBLANES * _LANES * 4),
        )(x2d, y2d)

        total = total + jnp.sum(partials)

    if n_main < n:
        # Ragged tail (< 1024 elements): plain JAX, negligible cost, avoids any
        # HBM padding copy of the whole array.
        xt = x[n_main:].astype(jnp.float32)
        yt = y[n_main:].astype(jnp.float32)
        dt = xt - yt
        adt = jnp.abs(dt)
        tail_loss = jnp.where(adt < beta, dt * dt * inv_2beta, adt - half_beta)
        total = total + jnp.sum(tail_loss)

    return (total / jnp.float32(n)).astype(jnp.float32)


def _reference(inp, target, beta=_BETA):
    d = inp.astype(jnp.float32) - target.astype(jnp.float32)
    ad = jnp.abs(d)
    loss = jnp.where(ad < beta, 0.5 * d * d / beta, ad - 0.5 * beta)
    return jnp.mean(loss)


if __name__ == "__main__":
    key = jax.random.PRNGKey(0)
    loss_fn = jax.jit(weight_smooth_l1_loss)

    # Main check: NCHW-shaped inputs consistent with a typical use of this loss.
    k1, k2 = jax.random.split(key)
    shape = (2, 4, 16, 16)
    inp = jax.random.normal(k1, shape, dtype=jnp.float32)
    tgt = jax.random.normal(k2, shape, dtype=jnp.float32)
    out = jax.block_until_ready(loss_fn(inp, tgt))
    ref = _reference(inp, tgt)
    assert jnp.allclose(out, ref, rtol=1e-5, atol=1e-6), (out, ref)

    # Ragged check: exercises the plain-JAX tail path (size not a multiple of 1024).
    k3, k4 = jax.random.split(k2)
    shape2 = (2, 4, 17, 17)
    inp2 = jax.random.normal(k3, shape2, dtype=jnp.float32)
    tgt2 = jax.random.normal(k4, shape2, dtype=jnp.float32)
    out2 = jax.block_until_ready(loss_fn(inp2, tgt2))
    ref2 = _reference(inp2, tgt2)
    assert jnp.allclose(out2, ref2, rtol=1e-5, atol=1e-6), (out2, ref2)

    print("KERNEL_OK")
</pallas_src>

<mosaic_0001>
module attributes {stable_mosaic.version = 11 : i64} {
  func.func @_smooth_l1_partial_kernel(%arg0: i32, %arg1: i32, %arg2: memref<16x128xf32, #tpu.memory_space<vmem>>, %arg3: memref<16x128xf32, #tpu.memory_space<vmem>>, %arg4: memref<1x8x128xf32, #tpu.memory_space<vmem>>) attributes {dimension_semantics = [#tpu.dimension_semantics<parallel>, #tpu.dimension_semantics<arbitrary>], iteration_bounds = array<i64: 1, 1>, scalar_prefetch = 0 : i64, scratch_operands = 0 : i64, tpu.core_type = #tpu.core_type<tc>, window_params = [{transform_indices = @transform_0, window_bounds = array<i64: 16, 128>}, {transform_indices = @transform_1, window_bounds = array<i64: 16, 128>}, {transform_indices = @transform_2, window_bounds = array<i64: 1, 8, 128>}]} {
    %c0_i32 = arith.constant 0 : i32
    %0 = arith.cmpi eq, %arg1, %c0_i32 : i32
    %1 = arith.extui %0 : i1 to i32
    %c0_i32_0 = arith.constant 0 : i32
    %2 = arith.cmpi ne, %1, %c0_i32_0 : i32
    scf.if %2 {
      %cst_13 = arith.constant 0.000000e+00 : f32
      %21 = vector.broadcast %cst_13 : f32 to vector<1x8x128xf32>
      %c0_14 = arith.constant 0 : index
      %c0_15 = arith.constant 0 : index
      %c0_16 = arith.constant 0 : index
      %22 = vector.load %arg4[%c0_14, %c0_15, %c0_16] : memref<1x8x128xf32, #tpu.memory_space<vmem>>, vector<1x8x128xf32>
      tpu.vector_store %arg4[%c0_14, %c0_15, %c0_16], %21 {strides = array<i32>} : memref<1x8x128xf32, #tpu.memory_space<vmem>>, vector<1x8x128xf32>,
    } else {
    }
    %c0 = arith.constant 0 : index
    %c0_1 = arith.constant 0 : index
    %3 = vector.load %arg2[%c0, %c0_1] : memref<16x128xf32, #tpu.memory_space<vmem>>, vector<16x128xf32>
    %c0_2 = arith.constant 0 : index
    %c0_3 = arith.constant 0 : index
    %4 = vector.load %arg3[%c0_2, %c0_3] : memref<16x128xf32, #tpu.memory_space<vmem>>, vector<16x128xf32>
    %5 = arith.subf %3, %4 : vector<16x128xf32>
    %6 = math.absf %5 : vector<16x128xf32>
    %cst = arith.constant 1.000000e-01 : f32
    %7 = vector.broadcast %cst : f32 to vector<16x128xf32>
    %8 = arith.cmpf olt, %6, %7 : vector<16x128xf32>
    %9 = arith.mulf %5, %5 : vector<16x128xf32>
    %cst_4 = arith.constant 5.000000e+00 : f32
    %10 = vector.broadcast %cst_4 : f32 to vector<16x128xf32>
    %11 = arith.mulf %9, %10 : vector<16x128xf32>
    %cst_5 = arith.constant 5.000000e-02 : f32
    %12 = vector.broadcast %cst_5 : f32 to vector<16x128xf32>
    %13 = arith.subf %6, %12 : vector<16x128xf32>
    %14 = arith.select %8, %11, %13 : vector<16x128xi1>, vector<16x128xf32>
    %15 = vector.shape_cast %14 : vector<16x128xf32> to vector<2x8x128xf32>
    %cst_6 = arith.constant dense<0.000000e+00> : vector<8x128xf32>
    %16 = vector.multi_reduction <add>, %15, %cst_6 [0] : vector<2x8x128xf32> to vector<8x128xf32>
    %c0_7 = arith.constant 0 : index
    %c0_8 = arith.constant 0 : index
    %c0_9 = arith.constant 0 : index
    %17 = vector.load %arg4[%c0_7, %c0_8, %c0_9] : memref<1x8x128xf32, #tpu.memory_space<vmem>>, vector<1x8x128xf32>
    %18 = vector.shape_cast %16 : vector<8x128xf32> to vector<1x8x128xf32>
    %19 = arith.addf %17, %18 : vector<1x8x128xf32>
    %c0_10 = arith.constant 0 : index
    %c0_11 = arith.constant 0 : index
    %c0_12 = arith.constant 0 : index
    %20 = vector.load %arg4[%c0_10, %c0_11, %c0_12] : memref<1x8x128xf32, #tpu.memory_space<vmem>>, vector<1x8x128xf32>
    tpu.vector_store %arg4[%c0_10, %c0_11, %c0_12], %19 {strides = array<i32>} : memref<1x8x128xf32, #tpu.memory_space<vmem>>, vector<1x8x128xf32>,
    return
  }
  func.func @transform_0(%arg0: i32, %arg1: i32) -> (i32, i32) {
    %c1_i32 = arith.constant 1 : i32
    %0 = arith.muli %arg0, %c1_i32 : i32
    %1 = arith.addi %0, %arg1 : i32
    %c0_i32 = arith.constant 0 : i32
    %2 = arith.minsi %1, %c0_i32 : i32
    %c0_i32_0 = arith.constant 0 : i32
    %c0_i32_1 = arith.constant 0 : i32
    return %2, %c0_i32_0 : i32, i32
  }
  func.func @transform_1(%arg0: i32, %arg1: i32) -> (i32, i32) {
    %c1_i32 = arith.constant 1 : i32
    %0 = arith.muli %arg0, %c1_i32 : i32
    %1 = arith.addi %0, %arg1 : i32
    %c0_i32 = arith.constant 0 : i32
    %2 = arith.minsi %1, %c0_i32 : i32
    %c0_i32_0 = arith.constant 0 : i32
    %c0_i32_1 = arith.constant 0 : i32
    return %2, %c0_i32_0 : i32, i32
  }
  func.func @transform_2(%arg0: i32, %arg1: i32) -> (i32, i32, i32) {
    %c0_i32 = arith.constant 0 : i32
    %c0_i32_0 = arith.constant 0 : i32
    %c0_i32_1 = arith.constant 0 : i32
    return %arg0, %c0_i32, %c0_i32_0 : i32, i32, i32
  }
}

</mosaic_0001>

<llo_original>
// kernel: weight_smooth_l1_loss.1
$region0: #{weight_smooth_l1_loss.1}
  #allocation0 [shape = 'u32[]', space=smem, size = 0x4, offset = 0x4, fixed_abs, tag = 'smem constant byte address 0x4 - core index']
  #allocation1 [shape = 'u32[144,128]{1,0:T(1,128)}', space=vmem, size = 0x12000, scoped, tag = 'internal scratch']
  %s0 = inlined_call_operand.vmem [shape: f32[16,128], index: 0, kind: input, shape index: {}]
  %s1 = inlined_call_operand.vmem [shape: f32[16,128], index: 1, kind: input, shape index: {}]
  %s2 = inlined_call_operand.vmem [shape: f32[1,8,128], index: 2, kind: output, shape index: {}]
  %s3 = sld [smem:[#allocation0]]
  $region22: #{weight_smooth_l1_loss.1} parent=0
    _
  %s5 = ssub.s32 1, %s3
  %s6 = scalar_select 0, %s5, %s3
  // Predicated region
  $region2: #{weight_smooth_l1_loss.1} parent=0 // pred_check
    _
  $region3: #{weight_smooth_l1_loss.1} parent=0 // pred_check_branch
    %8 = sbr.rel (0) target = $region5
  $region4: #{weight_smooth_l1_loss.1} parent=0 // pred_region
    %s9 = sadd.s32 0, 0
    %p10 = scmp.lt.s32.totalorder %s9, 0
    %s11 = scalar_select %p10, %s9, 0
    %s12 = smul.u32 2, %s11
    %p13 = scmp.lt.s32.totalorder %s12, 1
    %s14 = scalar_select %p13, %s12, 1
    %s15 = smul.addr %s14, 8
    %s16 = scalar_lea.vmem %s0, %s15
    %s17 = sadd.s32 0, 0
    %p18 = scmp.lt.s32.totalorder %s17, 0
    %s19 = scalar_select %p18, %s17, 0
    %s20 = smul.u32 2, %s19
  $region5: #{weight_smooth_l1_loss.1} parent=0 // pred_fallthru
    _
  // Predicated region
  $region6: #{weight_smooth_l1_loss.1} parent=0 // pred_check
    _
  $region7: #{weight_smooth_l1_loss.1} parent=0 // pred_check_branch
    %22 = sbr.rel (0) target = $region9
  $region8: #{weight_smooth_l1_loss.1} parent=0 // pred_region
    %s23 = sadd.s32 0, 0
    %p24 = scmp.lt.s32.totalorder %s23, 0
    %s25 = scalar_select %p24, %s23, 0
    %s26 = smul.u32 2, %s25
    %p27 = scmp.lt.s32.totalorder %s26, 1
    %s28 = scalar_select %p27, %s26, 1
    %s29 = smul.addr %s28, 8
    %s30 = scalar_lea.vmem %s1, %s29
    %s31 = sadd.s32 0, 0
    %p32 = scmp.lt.s32.totalorder %s31, 0
    %s33 = scalar_select %p32, %s31, 0
    %s34 = smul.u32 2, %s33
  $region9: #{weight_smooth_l1_loss.1} parent=0 // pred_fallthru
    _
  %s35 = sadd.s32 0, 0
  %p36 = scmp.lt.s32.totalorder %s35, 0
  %s37 = scalar_select %p36, %s35, 0
  %s38 = smul.u32 2, %s37
  %p39 = scmp.lt.s32.totalorder %s38, 1
  %s40 = scalar_select %p39, %s38, 1
  %s41 = smul.addr %s40, 8
  %s42 = scalar_lea.vmem %s0, %s41
  %s43 = sadd.s32 0, 0
  %p44 = scmp.lt.s32.totalorder %s43, 0
  %s45 = scalar_select %p44, %s43, 0
  %s46 = smul.u32 2, %s45
  %p47 = scmp.lt.s32.totalorder %s46, 1
  %s48 = scalar_select %p47, %s46, 1
  %s49 = smul.addr %s48, 8
  %s50 = scalar_lea.vmem %s1, %s49
  %s51 = sadd.s32 0, 0
  %p52 = scmp.lt.s32.totalorder %s51, 0
  %s53 = scalar_select %p52, %s51, 0
  %s54 = smul.u32 2, %s53
  %p55 = scmp.lt.s32.totalorder %s54, 1
  %s56 = scalar_select %p55, %s54, 1
  %s57 = smul.addr %s56, 8
  %s58 = scalar_lea.vmem %s0, %s57
  %s59 = sadd.s32 0, 0
  %p60 = scmp.lt.s32.totalorder %s59, 0
  %s61 = scalar_select %p60, %s59, 0
  %s62 = smul.u32 2, %s61
  %s63 = sadd.s32 0, 0
  %p64 = scmp.lt.s32.totalorder %s63, 0
  %s65 = scalar_select %p64, %s63, 0
  %s66 = smul.u32 2, %s65
  %p67 = scmp.lt.s32.totalorder %s66, 1
  %s68 = scalar_select %p67, %s66, 1
  %s69 = smul.addr %s68, 8
  %s70 = scalar_lea.vmem %s1, %s69
  %s71 = sadd.s32 0, 0
  %p72 = scmp.lt.s32.totalorder %s71, 0
  %s73 = scalar_select %p72, %s71, 0
  %s74 = smul.u32 2, %s73
  %p75 = scmp.eq.s32.totalorder 0, 0
  // Predicated region
  $region10: #{weight_smooth_l1_loss.1} parent=0 // pred_check
    %p76 = pneg %p75
  $region11: #{weight_smooth_l1_loss.1} parent=0 // pred_check_branch
    %78 = sbr.rel (%p76) target = $region13
  $region12: #{weight_smooth_l1_loss.1} parent=0 // pred_region
    %79 = vst [vmem:[%s2] sm:$0xff] 0.0
  $region13: #{weight_smooth_l1_loss.1} parent=0 // pred_fallthru
    _
  %v80 = vld [vmem:[%s58] sm:$0xff]
  %v81 = vld [vmem:[%s58 + $0x8] sm:$0xff]
  %v82 = vld [vmem:[%s70] sm:$0xff]
  %v83 = vld [vmem:[%s70 + $0x8] sm:$0xff]
  %v84 = vsub.f32 %v80, %v82
  %v85 = vsub.f32 %v81, %v83
  %v86 = vand.u32 2147483647, %v84
  %v87 = vand.u32 2147483647, %v85
  %vm88 = vcmp.lt.f32.partialorder %v86, 0.1
  %vm89 = vcmp.lt.f32.partialorder %v87, 0.1
  %v90 = vmul.f32 %v84, %v84
  %v91 = vmul.f32 %v85, %v85
  %v92 = vmul.f32 %v90, 5.0
  %v93 = vmul.f32 %v91, 5.0
  %v94 = vsub.f32 %v86, 0.05
  %v95 = vsub.f32 %v87, 0.05
  %v96 = vsel %vm88, %v92, %v94
  %v97 = vsel %vm89, %v93, %v95
  %v98 = vadd.f32 %v96, %v97
  %v99 = vld [vmem:[%s2] sm:$0xff]
  %v100 = vadd.f32 %v99, %v98
  %101 = vst [vmem:[%s2] sm:$0xff] %v100
  // Predicated region
  $region14: #{weight_smooth_l1_loss.1} parent=0 // pred_check
    _
  $region15: #{weight_smooth_l1_loss.1} parent=0 // pred_check_branch
    %103 = sbr.rel (0) target = $region17
  $region16: #{weight_smooth_l1_loss.1} parent=0 // pred_region
    _
  $region17: #{weight_smooth_l1_loss.1} parent=0 // pred_fallthru
    _
  // Predicated region
  $region18: #{weight_smooth_l1_loss.1} parent=0 // pred_check
    _
  $region19: #{weight_smooth_l1_loss.1} parent=0 // pred_check_branch
    %105 = sbr.rel (0) target = $region21
  $region20: #{weight_smooth_l1_loss.1} parent=0 // pred_region
    _
  $region21: #{weight_smooth_l1_loss.1} parent=0 // pred_fallthru
    _

</llo_original>
